<compile_context>
chip_gen: v5e
topology: v5e:2x2
jax: 0.10.0
libtpu: 0.0.40
codegen_flags: <defaults>
</compile_context>

<pallas_src>
import functools

import jax
import jax.numpy as jnp
from jax.experimental import pallas as pl
from jax.experimental.pallas import tpu as pltpu


def _round_up(x, m):
    return ((x + m - 1) // m) * m


def _ce_kernel(logits_ref, tgt_ref, out_ref, *, n_rows, tile_n):
    # logits_ref: (tile_n, C) VMEM tile in the input dtype
    # tgt_ref:    (tile_n, 1) int32 VMEM tile (lockstep with logits)
    # out_ref:    (1, 1) f32 SMEM block of the per-block partial-sum output
    pid = pl.program_id(0)

    x = logits_ref[...]                                            # (tile_n, C)

    # Global row ids of this block; zero out padded rows of a partial last
    # block *before* any reduction (robust against stale VMEM -> NaN/Inf).
    row = jax.lax.broadcasted_iota(jnp.int32, (tile_n, 1), 0) + pid * tile_n
    valid = row < n_rows                                           # (tile_n, 1)
    x = jnp.where(valid, x, jnp.zeros_like(x))

    # Row max in the input dtype (bf16-native VPU/XLU on v6e/v7x); only the
    # shifted values are promoted to f32.  Exact vs. an f32 reference because
    # the max of bf16 values is itself representable.
    m = jnp.max(x, axis=-1, keepdims=True)                         # (tile_n, 1)
    xm = x.astype(jnp.float32) - m.astype(jnp.float32)             # (tile_n, C) f32

    # loss_i = log(sum_j exp(x_ij - m_i)) - (x_i[t_i] - m_i)   (m_i cancels)
    lse0 = jnp.log(jnp.sum(jnp.exp(xm), axis=-1, keepdims=True))   # EUP + XLU

    # Target gather via lane-iota compare/select on the already-shifted xm
    # (no one-hot float matmul, no extra pass over the raw x).
    cls = jax.lax.broadcasted_iota(jnp.int32, xm.shape, 1)
    tgt_val = jnp.sum(jnp.where(cls == tgt_ref[...], xm, 0.0),
                      axis=-1, keepdims=True)                      # (tile_n, 1)

    per_sample = jnp.where(valid, lse0 - tgt_val, 0.0)             # (tile_n, 1)

    # Per-block partial sum -> independent output block (grid axis stays
    # 'parallel'; the final reduction over `grid` values happens in XLA).
    out_ref[0, 0] = jnp.sum(per_sample)


def cross_entropy_loss(logits, targets, *, tile_n=None, reduction="mean"):
    """Equivalent of F.cross_entropy(logits, targets) with weight=None.
    logits: (N, C) float (f32 or bf16); targets: (N,) integer class ids."""
    # TODO(synk): class `weight`, reduction='none' and ignore_index=-100 are
    # not wired up (module defaults are weight=None, reduction='mean').
    n, c = logits.shape
    itemsize = jnp.dtype(logits.dtype).itemsize

    # dtype-native sublane multiple: 8 for f32, 16 for bf16, 32 for 1-byte.
    sub = max(8, 32 // itemsize)

    # Generation-aware VMEM budget (64 MiB/TC on v7x, 128 MiB on v5e/v6e).
    try:
        vmem_cap = int(getattr(pltpu.get_tpu_info(), "vmem_capacity_bytes",
                               64 * 1024 * 1024))
    except Exception:
        vmem_cap = 64 * 1024 * 1024

    row_in = c * itemsize                 # input-dtype bytes per batch row
    row_f32 = c * 4                       # f32 bytes per batch row
    # Per-row VMEM cost: double-buffered input block + ~3 full-tile f32
    # intermediates (xm / exp / select) + double-buffered int32 targets.
    per_row = 2 * row_in + 3 * row_f32 + 2 * 4
    budget = vmem_cap // 2                # headroom for pipeline slack etc.

    if tile_n is None:
        tile_by_bytes = (8 * 1024 * 1024) // max(row_in, 1)   # ~8 MiB input block
        tile_by_vmem = budget // max(per_row, 1)
        tile_n = max(sub, min(tile_by_bytes, tile_by_vmem, _round_up(n, sub)))
    tile_n = max(sub, _round_up(int(tile_n), sub))
    grid = pl.cdiv(n, tile_n)

    vmem_limit = int(min(vmem_cap * 9 // 10,
                         max(32 * 1024 * 1024, tile_n * per_row + 8 * 1024 * 1024)))

    # Pad targets to a whole number of blocks (tiny, avoids OOB reads of the
    # skinny int32 tile on the remainder block; padded rows are masked anyway).
    n_pad = grid * tile_n
    tgt = targets.astype(jnp.int32).reshape(n, 1)
    if n_pad != n:
        tgt = jnp.pad(tgt, ((0, n_pad - n), (0, 0)))

    kernel = functools.partial(_ce_kernel, n_rows=n, tile_n=tile_n)

    partials = pl.pallas_call(
        kernel,
        out_shape=jax.ShapeDtypeStruct((grid, 1), jnp.float32),
        grid=(grid,),
        in_specs=[
            pl.BlockSpec((tile_n, c), lambda i: (i, 0)),   # logits tile
            pl.BlockSpec((tile_n, 1), lambda i: (i, 0)),   # targets tile
        ],
        out_specs=pl.BlockSpec((1, 1), lambda i: (i, 0),
                               memory_space=pltpu.SMEM),   # per-block partial
        compiler_params=pltpu.CompilerParams(
            dimension_semantics=("parallel",),             # no cross-step state
            vmem_limit_bytes=vmem_limit,
        ),
    )(logits, tgt)

    total = jnp.sum(partials)
    if reduction == "sum":
        return total
    # default: reduction='mean' with weight=None -> divide by batch size.
    return total / jnp.float32(n)
    # TODO(synk): very large C (LLM vocab) would need a class-axis grid with
    # an online logsumexp; not needed at these class counts.


def _reference(logits, targets):
    x = logits.astype(jnp.float32)
    lse = jax.nn.logsumexp(x, axis=-1)
    tl = jnp.take_along_axis(x, targets[:, None].astype(jnp.int32), axis=-1)[:, 0]
    return jnp.mean(lse - tl)


if __name__ == "__main__":
    key = jax.random.PRNGKey(0)
    k1, k2, k3, k4 = jax.random.split(key, 4)

    # Small case consistent with the module (weight=None, reduction='mean').
    N, C = 8, 32
    logits = jax.random.normal(k1, (N, C), dtype=jnp.float32)
    targets = jax.random.randint(k2, (N,), 0, C, dtype=jnp.int32)
    loss = cross_entropy_loss(logits, targets)
    jax.block_until_ready(loss)
    ref = _reference(logits, targets)
    assert jnp.allclose(loss, ref, atol=1e-5, rtol=1e-5), (loss, ref)

    # Larger, non-divisible case exercising the gridded, 'parallel',
    # masked-remainder path with bf16 logits streamed from HBM.
    N2, C2 = 300, 160
    logits2 = jax.random.normal(k3, (N2, C2), dtype=jnp.bfloat16)
    targets2 = jax.random.randint(k4, (N2,), 0, C2, dtype=jnp.int32)
    loss2 = cross_entropy_loss(logits2, targets2, tile_n=128)
    jax.block_until_ready(loss2)
    ref2 = _reference(logits2, targets2)
    assert jnp.allclose(loss2, ref2, atol=1e-4, rtol=1e-4), (loss2, ref2)

    print("KERNEL_OK")
</pallas_src>

<mosaic_0001>
module attributes {stable_mosaic.version = 11 : i64} {
  func.func @_ce_kernel(%arg0: i32, %arg1: memref<8x32xf32, #tpu.memory_space<vmem>>, %arg2: memref<8x1xi32, #tpu.memory_space<vmem>>, %arg3: memref<1x1xf32, #tpu.memory_space<smem>>) attributes {dimension_semantics = [#tpu.dimension_semantics<parallel>], iteration_bounds = array<i64: 1>, scalar_prefetch = 0 : i64, scratch_operands = 0 : i64, tpu.core_type = #tpu.core_type<tc>, window_params = [{transform_indices = @transform_0, window_bounds = array<i64: 8, 32>}, {transform_indices = @transform_1, window_bounds = array<i64: 8, 1>}, {transform_indices = @transform_2, window_bounds = array<i64: 1, 1>}]} {
    %c0 = arith.constant 0 : index
    %c0_0 = arith.constant 0 : index
    %0 = vector.load %arg1[%c0, %c0_0] : memref<8x32xf32, #tpu.memory_space<vmem>>, vector<8x32xf32>
    %1 = tpu.iota {dimensions = array<i32: 0>} : vector<8x1xi32>
    %c8_i32 = arith.constant 8 : i32
    %2 = arith.muli %arg0, %c8_i32 : i32
    %3 = vector.broadcast %2 : i32 to vector<8x1xi32>
    %4 = arith.addi %1, %3 : vector<8x1xi32>
    %c8_i32_1 = arith.constant 8 : i32
    %5 = vector.broadcast %c8_i32_1 : i32 to vector<8x1xi32>
    %6 = arith.cmpi slt, %4, %5 : vector<8x1xi32>
    %cst = arith.constant 0.000000e+00 : f32
    %7 = vector.broadcast %cst : f32 to vector<8x32xf32>
    %8 = vector.shape_cast %6 : vector<8x1xi1> to vector<8x1xi1>
    %9 = vector.broadcast %8 : vector<8x1xi1> to vector<8x32xi1>
    %10 = arith.select %9, %0, %7 : vector<8x32xi1>, vector<8x32xf32>
    %cst_2 = arith.constant dense<0xFF800000> : vector<8xf32>
    %11 = vector.multi_reduction <maximumf>, %10, %cst_2 [1] : vector<8x32xf32> to vector<8xf32>
    %12 = vector.shape_cast %11 : vector<8xf32> to vector<8x1xf32>
    %13 = vector.broadcast %12 : vector<8x1xf32> to vector<8x32xf32>
    %14 = arith.subf %10, %13 : vector<8x32xf32>
    %15 = math.exp %14 : vector<8x32xf32>
    %cst_3 = arith.constant dense<0.000000e+00> : vector<8xf32>
    %16 = vector.multi_reduction <add>, %15, %cst_3 [1] : vector<8x32xf32> to vector<8xf32>
    %17 = vector.shape_cast %16 : vector<8xf32> to vector<8x1xf32>
    %18 = math.log %17 : vector<8x1xf32>
    %19 = tpu.iota {dimensions = array<i32: 1>} : vector<8x32xi32>
    %c0_4 = arith.constant 0 : index
    %c0_5 = arith.constant 0 : index
    %20 = vector.load %arg2[%c0_4, %c0_5] : memref<8x1xi32, #tpu.memory_space<vmem>>, vector<8x1xi32>
    %21 = vector.broadcast %20 : vector<8x1xi32> to vector<8x32xi32>
    %22 = arith.cmpi eq, %19, %21 : vector<8x32xi32>
    %cst_6 = arith.constant 0.000000e+00 : f32
    %23 = vector.broadcast %cst_6 : f32 to vector<8x32xf32>
    %24 = arith.select %22, %14, %23 : vector<8x32xi1>, vector<8x32xf32>
    %cst_7 = arith.constant dense<0.000000e+00> : vector<8xf32>
    %25 = vector.multi_reduction <add>, %24, %cst_7 [1] : vector<8x32xf32> to vector<8xf32>
    %26 = vector.shape_cast %25 : vector<8xf32> to vector<8x1xf32>
    %27 = arith.subf %18, %26 : vector<8x1xf32>
    %cst_8 = arith.constant 0.000000e+00 : f32
    %28 = vector.broadcast %cst_8 : f32 to vector<8x1xf32>
    %29 = arith.select %6, %27, %28 : vector<8x1xi1>, vector<8x1xf32>
    %30 = vector.shape_cast %29 : vector<8x1xf32> to vector<1x8x1xf32>
    %cst_9 = arith.constant dense<0.000000e+00> : vector<1xf32>
    %31 = vector.multi_reduction <add>, %30, %cst_9 [1, 2] : vector<1x8x1xf32> to vector<1xf32>
    %32 = vector.shape_cast %31 : vector<1xf32> to vector<1x1x1xf32>
    %33 = vector.extract %32[0, 0, 0] : f32 from vector<1x1x1xf32>
    %c0_10 = arith.constant 0 : index
    %c0_11 = arith.constant 0 : index
    %34 = memref.load %arg3[%c0_10, %c0_11] : memref<1x1xf32, #tpu.memory_space<smem>>
    memref.store %33, %arg3[%c0_10, %c0_11] : memref<1x1xf32, #tpu.memory_space<smem>>
    return
  }
  func.func @transform_0(%arg0: i32) -> (i32, i32) {
    %c0_i32 = arith.constant 0 : i32
    %c0_i32_0 = arith.constant 0 : i32
    return %arg0, %c0_i32 : i32, i32
  }
  func.func @transform_1(%arg0: i32) -> (i32, i32) {
    %c0_i32 = arith.constant 0 : i32
    %c0_i32_0 = arith.constant 0 : i32
    return %arg0, %c0_i32 : i32, i32
  }
  func.func @transform_2(%arg0: i32) -> (i32, i32) {
    %c0_i32 = arith.constant 0 : i32
    %c0_i32_0 = arith.constant 0 : i32
    return %arg0, %c0_i32 : i32, i32
  }
}

</mosaic_0001>

<llo_original>
// kernel: tpu_custom_call.1
$region0: #{tpu_custom_call.1}
  #allocation0 [shape = 'u32[]', space=smem, size = 0x4, offset = 0x4, fixed_abs, tag = 'smem constant byte address 0x4 - core index']
  #allocation1 [shape = 'u32[72,128]{1,0:T(1,128)}', space=vmem, size = 0x9000, scoped, tag = 'internal scratch']
  %s0 = inlined_call_operand.vmem [shape: f32[8,32], index: 0, kind: input, shape index: {}]
  %s1 = inlined_call_operand.vmem [shape: s32[8,1], index: 1, kind: input, shape index: {}]
  %s2 = inlined_call_operand.hbm [shape: f32[1,1], index: 2, kind: output, shape index: {}]
  %s3 = sld [smem:[#allocation0]]
  $region18: #{tpu_custom_call.1} parent=0
    _
  %s5 = ssub.s32 1, %s3
  %s6 = scalar_select 0, %s5, %s3
  $region1: #{tpu_custom_call.1} parent=0
    #allocation2 [shape = 'u8[512]{0}', space=smem, size = 0x200, scoped, tag = 'output window, operand 0, single buffered']
    #allocation3 [shape = 's32[1]{0}', space=sflag, size = 0x4, scoped, tag = 'scoped memory for tpu_custom_call.1']
    %7 = vsyncpa [#allocation3], 0
    // Predicated region
    $region2: #{tpu_custom_call.1} parent=1 // pred_check
      _
    $region3: #{tpu_custom_call.1} parent=1 // pred_check_branch
      %9 = sbr.rel (0) target = $region5
    $region4: #{tpu_custom_call.1} parent=1 // pred_region
      _
    $region5: #{tpu_custom_call.1} parent=1 // pred_fallthru
      _
    // Predicated region
    $region6: #{tpu_custom_call.1} parent=1 // pred_check
      _
    $region7: #{tpu_custom_call.1} parent=1 // pred_check_branch
      %11 = sbr.rel (0) target = $region9
    $region8: #{tpu_custom_call.1} parent=1 // pred_region
      _
    $region9: #{tpu_custom_call.1} parent=1 // pred_fallthru
      _
    %v12 = vld [vmem:[%s0] sm:$0xff]
    %v13 = vlaneseq
    %v14 = vshrl.u32 %v13, 7
    %s15 = smul.u32 0, 8
    %v16 = vstv %s15
    %v17 = vadd.s32 %v14, %v16
    %vm18 = vcmp.lt.s32.totalorder %v17, 8
    %v19 = vsel %vm18, 1, 0
    %vm20 = vcmp.eq.s32.totalorder %v19, 1
    %v21 = vsel %vm20, %v12, 0.0
    %vm22 = vcmask 261120
    %v23 = vsel %vm22, %v21, -inf
    %24 = vmax.xlane.f32.xlu0 %v23
    %v25 = vpop.xlane.xlu0 %24
    %v26 = vsub.f32 %v21, %v25
    %v27 = vmul.f32 %v26, 1.442695
    %v28 = vpow.pop %v27
    %v29 = vsel %vm22, %v28, 0.0
    %30 = vadd.xlane.f32.xlu0 %v29
    %v31 = vpop.xlane.xlu0 %30
    %v32 = vlog2.pop %v31
    %v33 = vmul.f32 %v32, 0.6931472
    %v34 = vlaneseq
    %v35 = vand.u32 %v34, 127
    %v36 = vld [vmem:[%s1] sm:$0xff]
    %37 = vset.pattern.permute.xlu0 0
    %38 = vperm.xlu0 %37, %v36
    %v39 = vpop.permute.xlu0 %38
    %vm40 = vcmp.eq.s32.totalorder %v35, %v39
    %v41 = vsel %vm40, %v26, 0.0
    %v42 = vsel %vm22, %v41, 0.0
    %43 = vadd.xlane.f32.xlu0 %v42
    %v44 = vpop.xlane.xlu0 %43
    %v45 = vsub.f32 %v33, %v44
    %v46 = vsel %vm18, %v45, 0.0
    %vm47 = vcmask 7168
    %v48 = vsel %vm47, %v46, 0.0
    %49 = vadd.xlane.f32.xlu0 %v48
    %v50 = vpop.xlane.xlu0 %49
    %v51 = vrot.slane %v50, 4
    %v52 = vadd.f32 %v50, %v51
    %v53 = vrot.slane %v52, 2
    %v54 = vadd.f32 %v52, %v53
    %v55 = vrot.slane %v54, 1
    %v56 = vadd.f32 %v54, %v55
    %s57 = vtos %v56
    %s58 = scalar_lea.smem [#allocation2], 0
    %59 = sst [smem:[%s58]] %s57
    // Predicated region
    $region10: #{tpu_custom_call.1} parent=1 // pred_check
      _
    $region11: #{tpu_custom_call.1} parent=1 // pred_check_branch
      %61 = sbr.rel (0) target = $region13
    $region12: #{tpu_custom_call.1} parent=1 // pred_region
      %63 = vsyncadd [#allocation3], 0
      %s65 = sshll.u32 %s2, 4
      %s66 = int_to_ptr.hbm [resolvable:$true] %s65
      %68 = dma.smem_to_hbm [#allocation2], 16, %s66, [#allocation3]
    $region13: #{tpu_custom_call.1} parent=1 // pred_fallthru
      _
    // Predicated region
    $region14: #{tpu_custom_call.1} parent=1 // pred_check
      _
    $region15: #{tpu_custom_call.1} parent=1 // pred_check_branch
      %70 = sbr.rel (0) target = $region17
    $region16: #{tpu_custom_call.1} parent=1 // pred_region
      %72 = dma.done [#allocation3], 16
    $region17: #{tpu_custom_call.1} parent=1 // pred_fallthru
      _
    %73 = sfence
    %74 = vsyncpa [#allocation3], 1

</llo_original>
